<compile_context>
chip_gen: v7x
topology: tpu7x:2x2x1
jax: 0.10.0
libtpu: 0.0.40
codegen_flags: <defaults>
</compile_context>

<pallas_src>
import jax
import jax.numpy as jnp
from jax.experimental import pallas as pl
from jax.experimental.pallas import tpu as pltpu

IN_FEATURES = 28 * 28   # 784
HIDDEN = 100
OUT_FEATURES = 10
HP = 128                # hidden / output width padded to one full lane width


def _round_up(n, m):
    return ((n + m - 1) // m) * m


def _sigmoid_bf16(x):
    """sigmoid(x) = 0.5*tanh(0.5*x) + 0.5, evaluated in bf16 (single EUP op)."""
    xb = x.astype(jnp.bfloat16)
    return jnp.tanh(xb * 0.5) * 0.5 + 0.5          # stays bf16 (weak-typed consts)


def _mlp_kernel(x_ref,
                w1_ref, b1_ref,
                w2_ref, b2_ref,
                w3_ref, b3_ref,
                w4_ref, b4_ref,
                o_ref):
    # Cast x to bf16 in-kernel (input streamed in its native dtype from HBM).
    x = x_ref[...].astype(jnp.bfloat16)                                   # [TB, 784]

    # bf16 operands on the MXU, f32 accumulation; bias-add in f32, sigmoid in bf16.
    h = jnp.dot(x, w1_ref[...], preferred_element_type=jnp.float32) + b1_ref[...]
    h = _sigmoid_bf16(h)                                                  # [TB, 128] bf16

    h = jnp.dot(h, w2_ref[...], preferred_element_type=jnp.float32) + b2_ref[...]
    h = _sigmoid_bf16(h)                                                  # [TB, 128] bf16

    h = jnp.dot(h, w3_ref[...], preferred_element_type=jnp.float32) + b3_ref[...]
    # Check() is a pure identity at forward time (it only stores the tensor).
    h = _sigmoid_bf16(h)                                                  # [TB, 128] bf16

    h = jnp.dot(h, w4_ref[...], preferred_element_type=jnp.float32) + b4_ref[...]
    o_ref[...] = _sigmoid_bf16(h)                                         # [TB, 128] bf16, lane-dense


def prepare_params(params):
    """One-time weight prep: zero-pad hidden/output dims to 128, cast matmul
    operands to bf16.  Call once and reuse across forward calls.

    Zero padding is exact: padded hidden columns become sigmoid(0)=0.5, but
    the corresponding zero weight rows of the next layer kill their
    contribution; padded output columns are sliced off in the wrapper.
    """
    def pad_w(w, rows, cols):
        w = jnp.asarray(w, jnp.float32)
        return jnp.pad(w, ((0, rows - w.shape[0]), (0, cols - w.shape[1]))).astype(jnp.bfloat16)

    def pad_b(b, cols):
        b = jnp.asarray(b, jnp.float32)
        return jnp.pad(b, ((0, 0), (0, cols - b.shape[1])))

    return (pad_w(params["w1"], IN_FEATURES, HP), pad_b(params["b1"], HP),
            pad_w(params["w2"], HP, HP),          pad_b(params["b2"], HP),
            pad_w(params["w3"], HP, HP),          pad_b(params["b3"], HP),
            pad_w(params["w4"], HP, HP),          pad_b(params["b4"], HP))


def model_mnist_forward(x_nchw, prepared_params, *, batch_tile=2048, target_grid_steps=4):
    """x_nchw: [B, 1, 28, 28] (any float dtype).  prepared_params: prepare_params(...)."""
    B = x_nchw.shape[0]
    x = x_nchw.reshape(B, IN_FEATURES)     # Flatten: pure reshape, no cast, no pad

    # Batch tile: multiple of 8 sublanes, aim for >= target_grid_steps grid steps
    # (so both v7x TensorCores get work), capped so double-buffered x/out tiles +
    # resident weights stay well under the v7x 32 MiB default scoped-VMEM limit.
    TB = max(8, _round_up(pl.cdiv(B, target_grid_steps), 8))
    TB = min(TB, batch_tile)
    grid = (pl.cdiv(B, TB),)               # partial last block handled by Pallas masking

    w1, b1, w2, b2, w3, b3, w4, b4 = prepared_params

    x_spec = pl.BlockSpec((TB, IN_FEATURES), lambda i: (i, 0))   # streamed per grid step
    out_spec = pl.BlockSpec((TB, HP), lambda i: (i, 0))          # lane-dense (128) bf16 store

    def resident(shape):
        # index_map independent of i -> block stays resident in VMEM across all steps
        return pl.BlockSpec(shape, lambda i: (0, 0))

    w_specs = [resident((IN_FEATURES, HP)), resident((1, HP)),
               resident((HP, HP)),          resident((1, HP)),
               resident((HP, HP)),          resident((1, HP)),
               resident((HP, HP)),          resident((1, HP))]

    # VMEM budget (2x factors already included; not double-counted):
    x_itemsize = jnp.dtype(x.dtype).itemsize
    x_bytes = 2 * TB * IN_FEATURES * x_itemsize          # double-buffered x tiles
    out_bytes = 2 * TB * HP * 2                          # double-buffered bf16 out tiles
    w_raw = (IN_FEATURES * HP + 3 * HP * HP) * 2 + 4 * HP * 4
    w_bytes = 2 * w_raw                                  # resident weights (default 2 buffers)
    vmem_limit = min(x_bytes + out_bytes + w_bytes + (4 << 20), 30 << 20)

    flops = 2 * B * (IN_FEATURES * HP + 3 * HP * HP)
    transcendentals = 4 * B * HP                         # one tanh per sigmoid element
    bytes_accessed = B * IN_FEATURES * x_itemsize + B * HP * 2 + w_raw

    out = pl.pallas_call(
        _mlp_kernel,
        out_shape=jax.ShapeDtypeStruct((B, HP), jnp.bfloat16),
        grid=grid,
        in_specs=[x_spec] + w_specs,
        out_specs=out_spec,
        compiler_params=pltpu.CompilerParams(
            dimension_semantics=("parallel",),
            vmem_limit_bytes=int(vmem_limit)),
        cost_estimate=pl.CostEstimate(flops=int(flops),
                                      transcendentals=int(transcendentals),
                                      bytes_accessed=int(bytes_accessed)),
    )(x, w1, b1, w2, b2, w3, b3, w4, b4)

    return out[:, :OUT_FEATURES]


def init_params(key):
    """Deterministic parameter init mirroring nn.Linear shapes.

    PyTorch nn.Linear(in, out) has weight [out, in]; we store the transpose
    [in, out] so the kernel computes x @ W + b directly.  Biases are [1, out].
    """
    ks = jax.random.split(key, 8)

    def linear(kw, kb, fan_in, fan_out):
        bound = 1.0 / jnp.sqrt(fan_in)
        w = jax.random.uniform(kw, (fan_in, fan_out), jnp.float32, -bound, bound)
        b = jax.random.uniform(kb, (1, fan_out), jnp.float32, -bound, bound)
        return w, b

    w1, b1 = linear(ks[0], ks[1], IN_FEATURES, HIDDEN)
    w2, b2 = linear(ks[2], ks[3], HIDDEN, HIDDEN)
    w3, b3 = linear(ks[4], ks[5], HIDDEN, HIDDEN)
    w4, b4 = linear(ks[6], ks[7], HIDDEN, OUT_FEATURES)
    return {"w1": w1, "b1": b1, "w2": w2, "b2": b2,
            "w3": w3, "b3": b3, "w4": w4, "b4": b4}


def _reference_forward(x_nchw, params):
    """Pure-JAX f32 reference matching the PyTorch forward."""
    B = x_nchw.shape[0]
    h = x_nchw.reshape(B, -1).astype(jnp.float32)
    h = jax.nn.sigmoid(h @ params["w1"] + params["b1"])
    h = jax.nn.sigmoid(h @ params["w2"] + params["b2"])
    h = jax.nn.sigmoid(h @ params["w3"] + params["b3"])   # Check() is identity
    return jax.nn.sigmoid(h @ params["w4"] + params["b4"])


if __name__ == "__main__":
    key = jax.random.PRNGKey(0)
    k_x, k_p = jax.random.split(key)

    B = 2
    x = jax.random.normal(k_x, (B, 1, 28, 28), dtype=jnp.float32)   # MNIST-like NCHW
    params = init_params(k_p)
    prepared = prepare_params(params)        # one-time weight padding / bf16 cast

    out = model_mnist_forward(x, prepared)
    out = jax.block_until_ready(out)

    ref = _reference_forward(x, params)
    assert out.shape == (B, OUT_FEATURES)
    # bf16 matmul operands + bf16 sigmoid/output -> relaxed tolerance vs f32 reference
    out_f32 = out.astype(jnp.float32)
    assert jnp.allclose(out_f32, ref, atol=2e-2, rtol=2e-2), \
        float(jnp.max(jnp.abs(out_f32 - ref)))

    print("KERNEL_OK")
</pallas_src>

<mosaic_0001>
module attributes {stable_mosaic.version = 11 : i64} {
  func.func @_mlp_kernel(%arg0: i32, %arg1: memref<8x784xf32, #tpu.memory_space<vmem>>, %arg2: memref<784x128xbf16, #tpu.memory_space<vmem>>, %arg3: memref<1x128xf32, #tpu.memory_space<vmem>>, %arg4: memref<128x128xbf16, #tpu.memory_space<vmem>>, %arg5: memref<1x128xf32, #tpu.memory_space<vmem>>, %arg6: memref<128x128xbf16, #tpu.memory_space<vmem>>, %arg7: memref<1x128xf32, #tpu.memory_space<vmem>>, %arg8: memref<128x128xbf16, #tpu.memory_space<vmem>>, %arg9: memref<1x128xf32, #tpu.memory_space<vmem>>, %arg10: memref<8x128xbf16, #tpu.memory_space<vmem>>) attributes {dimension_semantics = [#tpu.dimension_semantics<parallel>], iteration_bounds = array<i64: 1>, scalar_prefetch = 0 : i64, scratch_operands = 0 : i64, tpu.core_type = #tpu.core_type<tc>, window_params = [{transform_indices = @transform_0, window_bounds = array<i64: 8, 784>}, {pipeline_mode = #tpu.pipeline_mode<synchronous>, transform_indices = @transform_1, window_bounds = array<i64: 784, 128>}, {pipeline_mode = #tpu.pipeline_mode<synchronous>, transform_indices = @transform_2, window_bounds = array<i64: 1, 128>}, {pipeline_mode = #tpu.pipeline_mode<synchronous>, transform_indices = @transform_3, window_bounds = array<i64: 128, 128>}, {pipeline_mode = #tpu.pipeline_mode<synchronous>, transform_indices = @transform_4, window_bounds = array<i64: 1, 128>}, {pipeline_mode = #tpu.pipeline_mode<synchronous>, transform_indices = @transform_5, window_bounds = array<i64: 128, 128>}, {pipeline_mode = #tpu.pipeline_mode<synchronous>, transform_indices = @transform_6, window_bounds = array<i64: 1, 128>}, {pipeline_mode = #tpu.pipeline_mode<synchronous>, transform_indices = @transform_7, window_bounds = array<i64: 128, 128>}, {pipeline_mode = #tpu.pipeline_mode<synchronous>, transform_indices = @transform_8, window_bounds = array<i64: 1, 128>}, {transform_indices = @transform_9, window_bounds = array<i64: 8, 128>}]} {
    %c0 = arith.constant 0 : index
    %c0_0 = arith.constant 0 : index
    %0 = vector.load %arg1[%c0, %c0_0] : memref<8x784xf32, #tpu.memory_space<vmem>>, vector<8x784xf32>
    %1 = arith.truncf %0 : vector<8x784xf32> to vector<8x784xbf16>
    %c0_1 = arith.constant 0 : index
    %c0_2 = arith.constant 0 : index
    %2 = vector.load %arg2[%c0_1, %c0_2] : memref<784x128xbf16, #tpu.memory_space<vmem>>, vector<784x128xbf16>
    %cst = arith.constant dense<0.000000e+00> : vector<8x128xf32>
    %3 = tpu.matmul %1, %2, %cst {dimension_numbers = #tpu.dot_dimension_numbers<[1], [0], [0], [1], [0, 0, 1, 1], [], []>} : vector<8x784xbf16>, vector<784x128xbf16>, vector<8x128xf32> -> vector<8x128xf32>
    %c0_3 = arith.constant 0 : index
    %c0_4 = arith.constant 0 : index
    %4 = vector.load %arg3[%c0_3, %c0_4] : memref<1x128xf32, #tpu.memory_space<vmem>>, vector<1x128xf32>
    %5 = vector.broadcast %4 : vector<1x128xf32> to vector<8x128xf32>
    %6 = arith.addf %3, %5 : vector<8x128xf32>
    %7 = arith.truncf %6 : vector<8x128xf32> to vector<8x128xbf16>
    %cst_5 = arith.constant 5.000000e-01 : bf16
    %8 = vector.broadcast %cst_5 : bf16 to vector<8x128xbf16>
    %9 = arith.mulf %7, %8 : vector<8x128xbf16>
    %10 = math.tanh %9 : vector<8x128xbf16>
    %cst_6 = arith.constant 5.000000e-01 : bf16
    %11 = vector.broadcast %cst_6 : bf16 to vector<8x128xbf16>
    %12 = arith.mulf %10, %11 : vector<8x128xbf16>
    %cst_7 = arith.constant 5.000000e-01 : bf16
    %13 = vector.broadcast %cst_7 : bf16 to vector<8x128xbf16>
    %14 = arith.addf %12, %13 : vector<8x128xbf16>
    %c0_8 = arith.constant 0 : index
    %c0_9 = arith.constant 0 : index
    %15 = vector.load %arg4[%c0_8, %c0_9] : memref<128x128xbf16, #tpu.memory_space<vmem>>, vector<128x128xbf16>
    %cst_10 = arith.constant dense<0.000000e+00> : vector<8x128xf32>
    %16 = tpu.matmul %14, %15, %cst_10 {dimension_numbers = #tpu.dot_dimension_numbers<[1], [0], [0], [1], [0, 0, 1, 1], [], []>} : vector<8x128xbf16>, vector<128x128xbf16>, vector<8x128xf32> -> vector<8x128xf32>
    %c0_11 = arith.constant 0 : index
    %c0_12 = arith.constant 0 : index
    %17 = vector.load %arg5[%c0_11, %c0_12] : memref<1x128xf32, #tpu.memory_space<vmem>>, vector<1x128xf32>
    %18 = vector.broadcast %17 : vector<1x128xf32> to vector<8x128xf32>
    %19 = arith.addf %16, %18 : vector<8x128xf32>
    %20 = arith.truncf %19 : vector<8x128xf32> to vector<8x128xbf16>
    %cst_13 = arith.constant 5.000000e-01 : bf16
    %21 = vector.broadcast %cst_13 : bf16 to vector<8x128xbf16>
    %22 = arith.mulf %20, %21 : vector<8x128xbf16>
    %23 = math.tanh %22 : vector<8x128xbf16>
    %cst_14 = arith.constant 5.000000e-01 : bf16
    %24 = vector.broadcast %cst_14 : bf16 to vector<8x128xbf16>
    %25 = arith.mulf %23, %24 : vector<8x128xbf16>
    %cst_15 = arith.constant 5.000000e-01 : bf16
    %26 = vector.broadcast %cst_15 : bf16 to vector<8x128xbf16>
    %27 = arith.addf %25, %26 : vector<8x128xbf16>
    %c0_16 = arith.constant 0 : index
    %c0_17 = arith.constant 0 : index
    %28 = vector.load %arg6[%c0_16, %c0_17] : memref<128x128xbf16, #tpu.memory_space<vmem>>, vector<128x128xbf16>
    %cst_18 = arith.constant dense<0.000000e+00> : vector<8x128xf32>
    %29 = tpu.matmul %27, %28, %cst_18 {dimension_numbers = #tpu.dot_dimension_numbers<[1], [0], [0], [1], [0, 0, 1, 1], [], []>} : vector<8x128xbf16>, vector<128x128xbf16>, vector<8x128xf32> -> vector<8x128xf32>
    %c0_19 = arith.constant 0 : index
    %c0_20 = arith.constant 0 : index
    %30 = vector.load %arg7[%c0_19, %c0_20] : memref<1x128xf32, #tpu.memory_space<vmem>>, vector<1x128xf32>
    %31 = vector.broadcast %30 : vector<1x128xf32> to vector<8x128xf32>
    %32 = arith.addf %29, %31 : vector<8x128xf32>
    %33 = arith.truncf %32 : vector<8x128xf32> to vector<8x128xbf16>
    %cst_21 = arith.constant 5.000000e-01 : bf16
    %34 = vector.broadcast %cst_21 : bf16 to vector<8x128xbf16>
    %35 = arith.mulf %33, %34 : vector<8x128xbf16>
    %36 = math.tanh %35 : vector<8x128xbf16>
    %cst_22 = arith.constant 5.000000e-01 : bf16
    %37 = vector.broadcast %cst_22 : bf16 to vector<8x128xbf16>
    %38 = arith.mulf %36, %37 : vector<8x128xbf16>
    %cst_23 = arith.constant 5.000000e-01 : bf16
    %39 = vector.broadcast %cst_23 : bf16 to vector<8x128xbf16>
    %40 = arith.addf %38, %39 : vector<8x128xbf16>
    %c0_24 = arith.constant 0 : index
    %c0_25 = arith.constant 0 : index
    %41 = vector.load %arg8[%c0_24, %c0_25] : memref<128x128xbf16, #tpu.memory_space<vmem>>, vector<128x128xbf16>
    %cst_26 = arith.constant dense<0.000000e+00> : vector<8x128xf32>
    %42 = tpu.matmul %40, %41, %cst_26 {dimension_numbers = #tpu.dot_dimension_numbers<[1], [0], [0], [1], [0, 0, 1, 1], [], []>} : vector<8x128xbf16>, vector<128x128xbf16>, vector<8x128xf32> -> vector<8x128xf32>
    %c0_27 = arith.constant 0 : index
    %c0_28 = arith.constant 0 : index
    %43 = vector.load %arg9[%c0_27, %c0_28] : memref<1x128xf32, #tpu.memory_space<vmem>>, vector<1x128xf32>
    %44 = vector.broadcast %43 : vector<1x128xf32> to vector<8x128xf32>
    %45 = arith.addf %42, %44 : vector<8x128xf32>
    %46 = arith.truncf %45 : vector<8x128xf32> to vector<8x128xbf16>
    %cst_29 = arith.constant 5.000000e-01 : bf16
    %47 = vector.broadcast %cst_29 : bf16 to vector<8x128xbf16>
    %48 = arith.mulf %46, %47 : vector<8x128xbf16>
    %49 = math.tanh %48 : vector<8x128xbf16>
    %cst_30 = arith.constant 5.000000e-01 : bf16
    %50 = vector.broadcast %cst_30 : bf16 to vector<8x128xbf16>
    %51 = arith.mulf %49, %50 : vector<8x128xbf16>
    %cst_31 = arith.constant 5.000000e-01 : bf16
    %52 = vector.broadcast %cst_31 : bf16 to vector<8x128xbf16>
    %53 = arith.addf %51, %52 : vector<8x128xbf16>
    %c0_32 = arith.constant 0 : index
    %c0_33 = arith.constant 0 : index
    %54 = vector.load %arg10[%c0_32, %c0_33] : memref<8x128xbf16, #tpu.memory_space<vmem>>, vector<8x128xbf16>
    tpu.vector_store %arg10[%c0_32, %c0_33], %53 {strides = array<i32>} : memref<8x128xbf16, #tpu.memory_space<vmem>>, vector<8x128xbf16>,
    return
  }
  func.func @transform_0(%arg0: i32) -> (i32, i32) {
    %c0_i32 = arith.constant 0 : i32
    %c0_i32_0 = arith.constant 0 : i32
    return %arg0, %c0_i32 : i32, i32
  }
  func.func @transform_1(%arg0: i32) -> (i32, i32) {
    %c0_i32 = arith.constant 0 : i32
    %c0_i32_0 = arith.constant 0 : i32
    %c0_i32_1 = arith.constant 0 : i32
    return %c0_i32, %c0_i32_0 : i32, i32
  }
  func.func @transform_2(%arg0: i32) -> (i32, i32) {
    %c0_i32 = arith.constant 0 : i32
    %c0_i32_0 = arith.constant 0 : i32
    %c0_i32_1 = arith.constant 0 : i32
    return %c0_i32, %c0_i32_0 : i32, i32
  }
  func.func @transform_3(%arg0: i32) -> (i32, i32) {
    %c0_i32 = arith.constant 0 : i32
    %c0_i32_0 = arith.constant 0 : i32
    %c0_i32_1 = arith.constant 0 : i32
    return %c0_i32, %c0_i32_0 : i32, i32
  }
  func.func @transform_4(%arg0: i32) -> (i32, i32) {
    %c0_i32 = arith.constant 0 : i32
    %c0_i32_0 = arith.constant 0 : i32
    %c0_i32_1 = arith.constant 0 : i32
    return %c0_i32, %c0_i32_0 : i32, i32
  }
  func.func @transform_5(%arg0: i32) -> (i32, i32) {
    %c0_i32 = arith.constant 0 : i32
    %c0_i32_0 = arith.constant 0 : i32
    %c0_i32_1 = arith.constant 0 : i32
    return %c0_i32, %c0_i32_0 : i32, i32
  }
  func.func @transform_6(%arg0: i32) -> (i32, i32) {
    %c0_i32 = arith.constant 0 : i32
    %c0_i32_0 = arith.constant 0 : i32
    %c0_i32_1 = arith.constant 0 : i32
    return %c0_i32, %c0_i32_0 : i32, i32
  }
  func.func @transform_7(%arg0: i32) -> (i32, i32) {
    %c0_i32 = arith.constant 0 : i32
    %c0_i32_0 = arith.constant 0 : i32
    %c0_i32_1 = arith.constant 0 : i32
    return %c0_i32, %c0_i32_0 : i32, i32
  }
  func.func @transform_8(%arg0: i32) -> (i32, i32) {
    %c0_i32 = arith.constant 0 : i32
    %c0_i32_0 = arith.constant 0 : i32
    %c0_i32_1 = arith.constant 0 : i32
    return %c0_i32, %c0_i32_0 : i32, i32
  }
  func.func @transform_9(%arg0: i32) -> (i32, i32) {
    %c0_i32 = arith.constant 0 : i32
    %c0_i32_0 = arith.constant 0 : i32
    return %arg0, %c0_i32 : i32, i32
  }
}

</mosaic_0001>

<llo_original>
// kernel: tpu_custom_call.1
$region0: #{tpu_custom_call.1}
  #allocation0 [shape = 'u32[]', space=smem, size = 0x4, offset = 0x4, fixed_abs, tag = 'smem constant byte address 0x4 - core index']
  #allocation1 [shape = 'u32[144,128]{1,0:T(1,128)}', space=vmem, size = 0x12000, scoped, tag = 'internal scratch']
  %s0 = inlined_call_operand.hbm [shape: f32[2,784], index: 0, kind: input, shape index: {}]
  %s1 = inlined_call_operand.hbm [shape: bf16[784,128], index: 1, kind: input, shape index: {}]
  %s2 = inlined_call_operand.vmem [shape: f32[1,128], index: 2, kind: input, shape index: {}]
  %s3 = inlined_call_operand.hbm [shape: bf16[128,128], index: 3, kind: input, shape index: {}]
  %s4 = inlined_call_operand.vmem [shape: f32[1,128], index: 4, kind: input, shape index: {}]
  %s5 = inlined_call_operand.hbm [shape: bf16[128,128], index: 5, kind: input, shape index: {}]
  %s6 = inlined_call_operand.vmem [shape: f32[1,128], index: 6, kind: input, shape index: {}]
  %s7 = inlined_call_operand.hbm [shape: bf16[128,128], index: 7, kind: input, shape index: {}]
  %s8 = inlined_call_operand.vmem [shape: f32[1,128], index: 8, kind: input, shape index: {}]
  %s9 = inlined_call_operand.hbm [shape: bf16[2,128], index: 9, kind: output, shape index: {}]
  %s10 = sld [smem:[#allocation0]]
  $region66: #{tpu_custom_call.1} parent=0
    _
  %s12 = ssub.s32 1, %s10
  %s13 = scalar_select 0, %s12, %s10
  $region1: #{tpu_custom_call.1} parent=0
    #allocation2 [shape = 'u8[28672]{0}', space=vmem, size = 0x7000, scoped, tag = 'input window, operand 0, single buffered']
    #allocation3 [shape = 's32[1]{0}', space=sflag, size = 0x4, scoped, tag = 'scoped memory for tpu_custom_call.1']
    #allocation4 [shape = 's32[1]{0}', space=sflag, size = 0x4, scoped, tag = 'scoped memory for tpu_custom_call.1']
    #allocation5 [shape = 'u8[200704]{0}', space=vmem, size = 0x31000, scoped, tag = 'input window, operand 1, single buffered']
    #allocation6 [shape = 's32[1]{0}', space=sflag, size = 0x4, scoped, tag = 'scoped memory for tpu_custom_call.1']
    #allocation7 [shape = 'u8[32768]{0}', space=vmem, size = 0x8000, scoped, tag = 'input window, operand 3, single buffered']
    #allocation8 [shape = 'u8[32768]{0}', space=vmem, size = 0x8000, scoped, tag = 'input window, operand 5, single buffered']
    #allocation9 [shape = 's32[1]{0}', space=sflag, size = 0x4, scoped, tag = 'scoped memory for tpu_custom_call.1']
    #allocation10 [shape = 'u8[32768]{0}', space=vmem, size = 0x8000, scoped, tag = 'input window, operand 7, single buffered']
    #allocation11 [shape = 'u8[2048]{0}', space=vmem, size = 0x800, scoped, tag = 'output window, operand 0, single buffered']
    %14 = vsyncpa [#allocation3], 0
    %15 = vsyncpa [#allocation6], 0
    %16 = vsyncpa [#allocation9], 0
    %17 = vsyncpa [#allocation4], 0
    // Predicated region
    $region2: #{tpu_custom_call.1} parent=1 // pred_check
      _
    $region3: #{tpu_custom_call.1} parent=1 // pred_check_branch
      %19 = sbr.rel (0) target = $region5
    $region4: #{tpu_custom_call.1} parent=1 // pred_region
      %s21 = ssub.s32 896, 224
      %22 = vsyncadd [#allocation3], %s21
      %s23 = sshll.u32 [#allocation2], 4
      %s24 = int_to_ptr.vmem [resolvable:$true] %s23
      %29 = dma.hbm_to_vmem [thread:$0]  %s0, 224, %s24, [#allocation3], 224, 224, 14
    $region5: #{tpu_custom_call.1} parent=1 // pred_fallthru
      _
    // Predicated region
    $region6: #{tpu_custom_call.1} parent=1 // pred_check
      _
    $region7: #{tpu_custom_call.1} parent=1 // pred_check_branch
      %31 = sbr.rel (0) target = $region9
    $region8: #{tpu_custom_call.1} parent=1 // pred_region
      %s33 = ssub.s32 6272, 6272
      %34 = vsyncadd [#allocation6], %s33
      %s35 = sshll.u32 [#allocation5], 4
      %s36 = int_to_ptr.vmem [resolvable:$true] %s35
      %41 = dma.hbm_to_vmem [thread:$0]  %s1, 6272, %s36, [#allocation6], 64, 64, 4
    $region9: #{tpu_custom_call.1} parent=1 // pred_fallthru
      _
    // Predicated region
    $region10: #{tpu_custom_call.1} parent=1 // pred_check
      _
    $region11: #{tpu_custom_call.1} parent=1 // pred_check_branch
      %43 = sbr.rel (0) target = $region13
    $region12: #{tpu_custom_call.1} parent=1 // pred_region
      _
    $region13: #{tpu_custom_call.1} parent=1 // pred_fallthru
      _
    // Predicated region
    $region14: #{tpu_custom_call.1} parent=1 // pred_check
      _
    $region15: #{tpu_custom_call.1} parent=1 // pred_check_branch
      %45 = sbr.rel (0) target = $region17
    $region16: #{tpu_custom_call.1} parent=1 // pred_region
      %s47 = ssub.s32 1024, 1024
      %48 = vsyncadd [#allocation6], %s47
      %s49 = sshll.u32 [#allocation7], 4
      %s50 = int_to_ptr.vmem [resolvable:$true] %s49
      %55 = dma.hbm_to_vmem [thread:$0]  %s3, 1024, %s50, [#allocation6], 64, 64, 4
    $region17: #{tpu_custom_call.1} parent=1 // pred_fallthru
      _
    // Predicated region
    $region18: #{tpu_custom_call.1} parent=1 // pred_check
      _
    $region19: #{tpu_custom_call.1} parent=1 // pred_check_branch
      %57 = sbr.rel (0) target = $region21
    $region20: #{tpu_custom_call.1} parent=1 // pred_region
      _
    $region21: #{tpu_custom_call.1} parent=1 // pred_fallthru
      _
    // Predicated region
    $region22: #{tpu_custom_call.1} parent=1 // pred_check
      _
    $region23: #{tpu_custom_call.1} parent=1 // pred_check_branch
      %59 = sbr.rel (0) target = $region25
    $region24: #{tpu_custom_call.1} parent=1 // pred_region
      %s61 = ssub.s32 1024, 1024
      %62 = vsyncadd [#allocation9], %s61
      %s63 = sshll.u32 [#allocation8], 4
      %s64 = int_to_ptr.vmem [resolvable:$true] %s63
      %69 = dma.hbm_to_vmem [thread:$0]  %s5, 1024, %s64, [#allocation9], 64, 64, 4
    $region25: #{tpu_custom_call.1} parent=1 // pred_fallthru
      _
    // Predicated region
    $region26: #{tpu_custom_call.1} parent=1 // pred_check
      _
    $region27: #{tpu_custom_call.1} parent=1 // pred_check_branch
      %71 = sbr.rel (0) target = $region29
    $region28: #{tpu_custom_call.1} parent=1 // pred_region
      _
    $region29: #{tpu_custom_call.1} parent=1 // pred_fallthru
      _
    // Predicated region
    $region30: #{tpu_custom_call.1} parent=1 // pred_check
      _
    $region31: #{tpu_custom_call.1} parent=1 // pred_check_branch
      %73 = sbr.rel (0) target = $region33
    $region32: #{tpu_custom_call.1} parent=1 // pred_region
      %s75 = ssub.s32 1024, 1024
      %76 = vsyncadd [#allocation9], %s75
      %s77 = sshll.u32 [#allocation10], 4
      %s78 = int_to_ptr.vmem [resolvable:$true] %s77
      %83 = dma.hbm_to_vmem [thread:$0]  %s7, 1024, %s78, [#allocation9], 64, 64, 4
    $region33: #{tpu_custom_call.1} parent=1 // pred_fallthru
      _
    // Predicated region
    $region34: #{tpu_custom_call.1} parent=1 // pred_check
      _
    $region35: #{tpu_custom_call.1} parent=1 // pred_check_branch
      %85 = sbr.rel (0) target = $region37
    $region36: #{tpu_custom_call.1} parent=1 // pred_region
      _
    $region37: #{tpu_custom_call.1} parent=1 // pred_fallthru
      _
    // Predicated region
    $region38: #{tpu_custom_call.1} parent=1 // pred_check
      _
    $region39: #{tpu_custom_call.1} parent=1 // pred_check_branch
      %87 = sbr.rel (0) target = $region41
    $region40: #{tpu_custom_call.1} parent=1 // pred_region
      %88 = dma.done [#allocation3], 896
    $region41: #{tpu_custom_call.1} parent=1 // pred_fallthru
      _
    // Predicated region
    $region42: #{tpu_custom_call.1} parent=1 // pred_check
      _
    $region43: #{tpu_custom_call.1} parent=1 // pred_check_branch
      %90 = sbr.rel (0) target = $region45
    $region44: #{tpu_custom_call.1} parent=1 // pred_region
      %91 = dma.done [#allocation6], 6272
    $region45: #{tpu_custom_call.1} parent=1 // pred_fallthru
      _
    // Predicated region
    $region46: #{tpu_custom_call.1} parent=1 // pred_check
      _
    $region47: #{tpu_custom_call.1} parent=1 // pred_check_branch
      %93 = sbr.rel (0) target = $region49
    $region48: #{tpu_custom_call.1} parent=1 // pred_region
      %94 = dma.done [#allocation6], 1024
    $region49: #{tpu_custom_call.1} parent=1 // pred_fallthru
      _
    // Predicated region
    $region50: #{tpu_custom_call.1} parent=1 // pred_check
      _
    $region51: #{tpu_custom_call.1} parent=1 // pred_check_branch
      %96 = sbr.rel (0) target = $region53
    $region52: #{tpu_custom_call.1} parent=1 // pred_region
      %97 = dma.done [#allocation9], 1024
    $region53: #{tpu_custom_call.1} parent=1 // pred_fallthru
      _
    // Predicated region
    $region54: #{tpu_custom_call.1} parent=1 // pred_check
      _
    $region55: #{tpu_custom_call.1} parent=1 // pred_check_branch
      %99 = sbr.rel (0) target = $region57
    $region56: #{tpu_custom_call.1} parent=1 // pred_region
      %100 = dma.done [#allocation9], 1024
    $region57: #{tpu_custom_call.1} parent=1 // pred_fallthru
      _
    %v103 = vld [vmem:[#allocation2] sm:$0xff]
    %v104 = vld [vmem:[#allocation2 + $0x8] sm:$0x3f]
    %v105 = vld [vmem:[#allocation2 + $0xe] sm:$0xff]
    %v106 = vld [vmem:[#allocation2 + $0x16] sm:$0x3f]
    %v107 = vld [vmem:[#allocation2 + $0x1c] sm:$0xff]
    %v108 = vld [vmem:[#allocation2 + $0x24] sm:$0x3f]
    %v109 = vld [vmem:[#allocation2 + $0x2a] sm:$0xff]
    %v110 = vld [vmem:[#allocation2 + $0x32] sm:$0x3f]
    %v119 = vcombine.low %v103, %v105
    %v120 = vcombine.high %v103, %v105
    %v121 = vcombine.low %v107, %v109
    %v122 = vcombine.high %v107, %v109
    %v124 = vunpack.c.l.s4 1983009808
    %v125 = vunpack.c.0.s8 %v124
    %v126 = vlaneseq
    %v127 = vshrl.u32 %v126, 7
    %v128 = vsub.s32 %v125, %v127
    %v129 = vrot.slane %v119, %v128
    %v131 = vunpack.c.l.s4 1983009808
    %v132 = vunpack.c.0.s8 %v131
    %v133 = vlaneseq
    %v134 = vshrl.u32 %v133, 7
    %v135 = vsub.s32 %v132, %v134
    %v136 = vrot.slane %v120, %v135
    %v138 = vunpack.c.l.s4 1983009808
    %v139 = vunpack.c.0.s8 %v138
    %v140 = vlaneseq
    %v141 = vshrl.u32 %v140, 7
    %v142 = vsub.s32 %v139, %v141
    %v143 = vrot.slane %v121, %v142
    %v145 = vunpack.c.l.s4 1983009808
    %v146 = vunpack.c.0.s8 %v145
    %v147 = vlaneseq
    %v148 = vshrl.u32 %v147, 7
    %v149 = vsub.s32 %v146, %v148
    %v150 = vrot.slane %v122, %v149
    %v151 = vcombine.low %v129, %v143
    %v152 = vcombine.high %v129, %v143
    %v153 = vcombine.low %v136, %v150
    %v154 = vcombine.high %v136, %v150
    %v155 = vcombine.low %v104, %v106
    %v156 = vcombine.high %v104, %v106
    %v157 = vcombine.low %v108, %v110
    %v158 = vcombine.high %v108, %v110
    %v160 = vunpack.c.l.s4 1983009808
    %v161 = vunpack.c.0.s8 %v160
    %v162 = vlaneseq
    %v163 = vshrl.u32 %v162, 7
    %v164 = vsub.s32 %v161, %v163
    %v165 = vrot.slane %v155, %v164
    %v167 = vunpack.c.l.s4 1983009808
    %v168 = vunpack.c.0.s8 %v167
    %v169 = vlaneseq
    %v170 = vshrl.u32 %v169, 7
    %v171 = vsub.s32 %v168, %v170
    %v172 = vrot.slane %v156, %v171
    %v174 = vunpack.c.l.s4 1983009808
    %v175 = vunpack.c.0.s8 %v174
    %v176 = vlaneseq
    %v177 = vshrl.u32 %v176, 7
    %v178 = vsub.s32 %v175, %v177
    %v179 = vrot.slane %v157, %v178
    %v181 = vunpack.c.l.s4 1983009808
    %v182 = vunpack.c.0.s8 %v181
    %v183 = vlaneseq
    %v184 = vshrl.u32 %v183, 7
    %v185 = vsub.s32 %v182, %v184
    %v186 = vrot.slane %v158, %v185
    %v187 = vcombine.low %v165, %v179
    %v188 = vcombine.high %v165, %v179
    %v189 = vcombine.low %v172, %v186
    %v197 = vpack.c.bf16 %v151, %v151
    %v198 = vpack.c.bf16 %v152, %v152
    %v199 = vpack.c.bf16 %v153, %v153
    %v200 = vpack.c.bf16 %v154, %v154
    %v201 = vpack.c.bf16 %v187, %v187
    %v202 = vpack.c.bf16 %v188, %v188
    %v203 = vpack.c.bf16 %v189, %v189
    %v204 = vld [vmem:[#allocation5] sm:$0xf]
    %v205 = vld [vmem:[#allocation5 + $0x4] sm:$0xf]
    %v206 = vld [vmem:[#allocation5 + $0x8] sm:$0xf]
    %v207 = vld [vmem:[#allocation5 + $0xc] sm:$0xf]
    %v208 = vld [vmem:[#allocation5 + $0x10] sm:$0xf]
    %v209 = vld [vmem:[#allocation5 + $0x14] sm:$0xf]
    %v210 = vld [vmem:[#allocation5 + $0x18] sm:$0xf]
    %v211 = vld [vmem:[#allocation5 + $0x1c] sm:$0xf]
    %v212 = vld [vmem:[#allocation5 + $0x20] sm:$0xf]
    %v213 = vld [vmem:[#allocation5 + $0x24] sm:$0xf]
    %v214 = vld [vmem:[#allocation5 + $0x28] sm:$0xf]
    %v215 = vld [vmem:[#allocation5 + $0x2c] sm:$0xf]
    %v216 = vld [vmem:[#allocation5 + $0x30] sm:$0xf]
    %v217 = vld [vmem:[#allocation5 + $0x34] sm:$0xf]
    %v218 = vld [vmem:[#allocation5 + $0x38] sm:$0xf]
    %v219 = vld [vmem:[#allocation5 + $0x3c] sm:$0xf]
    %v220 = vld [vmem:[#allocation5 + $0x40] sm:$0xf]
    %v221 = vld [vmem:[#allocation5 + $0x44] sm:$0xf]
    %v222 = vld [vmem:[#allocation5 + $0x48] sm:$0xf]
    %v223 = vld [vmem:[#allocation5 + $0x4c] sm:$0xf]
    %v224 = vld [vmem:[#allocation5 + $0x50] sm:$0xf]
    %v225 = vld [vmem:[#allocation5 + $0x54] sm:$0xf]
    %v226 = vld [vmem:[#allocation5 + $0x58] sm:$0xf]
    %v227 = vld [vmem:[#allocation5 + $0x5c] sm:$0xf]
    %v228 = vld [vmem:[#allocation5 + $0x60] sm:$0xf]
    %v229 = vld [vmem:[#allocation5 + $0x64] sm:$0xf]
    %v230 = vld [vmem:[#allocation5 + $0x68] sm:$0xf]
    %v231 = vld [vmem:[#allocation5 + $0x6c] sm:$0xf]
    %v232 = vld [vmem:[#allocation5 + $0x70] sm:$0xf]
    %v233 = vld [vmem:[#allocation5 + $0x74] sm:$0xf]
    %v234 = vld [vmem:[#allocation5 + $0x78] sm:$0xf]
    %v235 = vld [vmem:[#allocation5 + $0x7c] sm:$0xf]
    %v236 = vld [vmem:[#allocation5 + $0x80] sm:$0xf]
    %v237 = vld [vmem:[#allocation5 + $0x84] sm:$0xf]
    %v238 = vld [vmem:[#allocation5 + $0x88] sm:$0xf]
    %v239 = vld [vmem:[#allocation5 + $0x8c] sm:$0xf]
    %v240 = vld [vmem:[#allocation5 + $0x90] sm:$0xf]
    %v241 = vld [vmem:[#allocation5 + $0x94] sm:$0xf]
    %v242 = vld [vmem:[#allocation5 + $0x98] sm:$0xf]
    %v243 = vld [vmem:[#allocation5 + $0x9c] sm:$0xf]
    %v244 = vld [vmem:[#allocation5 + $0xa0] sm:$0xf]
    %v245 = vld [vmem:[#allocation5 + $0xa4] sm:$0xf]
    %v246 = vld [vmem:[#allocation5 + $0xa8] sm:$0xf]
    %v247 = vld [vmem:[#allocation5 + $0xac] sm:$0xf]
    %v248 = vld [vmem:[#allocation5 + $0xb0] sm:$0xf]
    %v249 = vld [vmem:[#allocation5 + $0xb4] sm:$0xf]
    %v250 = vld [vmem:[#allocation5 + $0xb8] sm:$0xf]
    %v251 = vld [vmem:[#allocation5 + $0xbc] sm:$0xf]
    %v252 = vld [vmem:[#allocation5 + $0xc0] sm:$0xf]
    %v253 = vld [vmem:[#allocation5 + $0xc4] sm:$0xf]
    %v254 = vld [vmem:[#allocation5 + $0xc8] sm:$0xf]
    %v255 = vld [vmem:[#allocation5 + $0xcc] sm:$0xf]
    %v256 = vld [vmem:[#allocation5 + $0xd0] sm:$0xf]
    %v257 = vld [vmem:[#allocation5 + $0xd4] sm:$0xf]
    %v258 = vld [vmem:[#allocation5 + $0xd8] sm:$0xf]
    %v259 = vld [vmem:[#allocation5 + $0xdc] sm:$0xf]
    %v260 = vld [vmem:[#allocation5 + $0xe0] sm:$0xf]
    %v261 = vld [vmem:[#allocation5 + $0xe4] sm:$0xf]
    %v262 = vld [vmem:[#allocation5 + $0xe8] sm:$0xf]
    %v263 = vld [vmem:[#allocation5 + $0xec] sm:$0xf]
    %v264 = vld [vmem:[#allocation5 + $0xf0] sm:$0xf]
    %v265 = vld [vmem:[#allocation5 + $0xf4] sm:$0xf]
    %v266 = vld [vmem:[#allocation5 + $0xf8] sm:$0xf]
    %v267 = vld [vmem:[#allocation5 + $0xfc] sm:$0xf]
    %v268 = vld [vmem:[#allocation5 + $0x100] sm:$0xf]
    %v269 = vld [vmem:[#allocation5 + $0x104] sm:$0xf]
    %v270 = vld [vmem:[#allocation5 + $0x108] sm:$0xf]
    %v271 = vld [vmem:[#allocation5 + $0x10c] sm:$0xf]
    %v272 = vld [vmem:[#allocation5 + $0x110] sm:$0xf]
    %v273 = vld [vmem:[#allocation5 + $0x114] sm:$0xf]
    %v274 = vld [vmem:[#allocation5 + $0x118] sm:$0xf]
    %v275 = vld [vmem:[#allocation5 + $0x11c] sm:$0xf]
    %v276 = vld [vmem:[#allocation5 + $0x120] sm:$0xf]
    %v277 = vld [vmem:[#allocation5 + $0x124] sm:$0xf]
    %v278 = vld [vmem:[#allocation5 + $0x128] sm:$0xf]
    %v279 = vld [vmem:[#allocation5 + $0x12c] sm:$0xf]
    %v280 = vld [vmem:[#allocation5 + $0x130] sm:$0xf]
    %v281 = vld [vmem:[#allocation5 + $0x134] sm:$0xf]
    %v282 = vld [vmem:[#allocation5 + $0x138] sm:$0xf]
    %v283 = vld [vmem:[#allocation5 + $0x13c] sm:$0xf]
    %v284 = vld [vmem:[#allocation5 + $0x140] sm:$0xf]
    %v285 = vld [vmem:[#allocation5 + $0x144] sm:$0xf]
    %v286 = vld [vmem:[#allocation5 + $0x148] sm:$0xf]
    %v287 = vld [vmem:[#allocation5 + $0x14c] sm:$0xf]
    %v288 = vld [vmem:[#allocation5 + $0x150] sm:$0xf]
    %v289 = vld [vmem:[#allocation5 + $0x154] sm:$0xf]
    %v290 = vld [vmem:[#allocation5 + $0x158] sm:$0xf]
    %v291 = vld [vmem:[#allocation5 + $0x15c] sm:$0xf]
    %v292 = vld [vmem:[#allocation5 + $0x160] sm:$0xf]
    %v293 = vld [vmem:[#allocation5 + $0x164] sm:$0xf]
    %v294 = vld [vmem:[#allocation5 + $0x168] sm:$0xf]
    %v295 = vld [vmem:[#allocation5 + $0x16c] sm:$0xf]
    %v296 = vld [vmem:[#allocation5 + $0x170] sm:$0xf]
    %v297 = vld [vmem:[#allocation5 + $0x174] sm:$0xf]
    %v298 = vld [vmem:[#allocation5 + $0x178] sm:$0xf]
    %v299 = vld [vmem:[#allocation5 + $0x17c] sm:$0xf]
    %v300 = vld [vmem:[#allocation5 + $0x180] sm:$0xf]
    %v301 = vld [vmem:[#allocation5 + $0x184] sm:$0xf]
    %v302 = vld [vmem:[%s2] sm:$0x1]
    %v304 = vlaneseq
    %v305 = vshrl.u32 %v304, 7
    %v306 = vsub.s32 0, %v305
    %v307 = vrot.slane %v302, %v306
    %v407 = vunpack.c.l.b16 %v204
    %v408 = vunpack.c.l.b16 %v205
    %v409 = vunpack.c.l.b16 %v206
    %v410 = vunpack.c.l.b16 %v207
    %v411 = vunpack.c.l.b16 %v208
    %v412 = vunpack.c.l.b16 %v209
    %v413 = vunpack.c.l.b16 %v210
    %v414 = vunpack.c.l.b16 %v211
    %v415 = vunpack.c.l.b16 %v212
    %v416 = vunpack.c.l.b16 %v213
    %v417 = vunpack.c.l.b16 %v214
    %v418 = vunpack.c.l.b16 %v215
    %v419 = vunpack.c.l.b16 %v216
    %v420 = vunpack.c.l.b16 %v217
    %v421 = vunpack.c.l.b16 %v218
    %v422 = vunpack.c.l.b16 %v219
    %v423 = vunpack.c.l.b16 %v220
    %v424 = vunpack.c.l.b16 %v221
    %v425 = vunpack.c.l.b16 %v222
    %v426 = vunpack.c.l.b16 %v223
    %v427 = vunpack.c.l.b16 %v224
    %v428 = vunpack.c.l.b16 %v225
    %v429 = vunpack.c.l.b16 %v226
    %v430 = vunpack.c.l.b16 %v227
    %v431 = vunpack.c.l.b16 %v228
    %v432 = vunpack.c.l.b16 %v229
    %v433 = vunpack.c.l.b16 %v230
    %v434 = vunpack.c.l.b16 %v231
    %v435 = vunpack.c.l.b16 %v232
    %v436 = vunpack.c.l.b16 %v233
    %v437 = vunpack.c.l.b16 %v234
    %v438 = vunpack.c.l.b16 %v235
    %v439 = vunpack.c.l.b16 %v236
    %v440 = vunpack.c.l.b16 %v237
    %v441 = vunpack.c.l.b16 %v238
    %v442 = vunpack.c.l.b16 %v239
    %v443 = vunpack.c.l.b16 %v240
    %v444 = vunpack.c.l.b16 %v241
    %v445 = vunpack.c.l.b16 %v242
    %v446 = vunpack.c.l.b16 %v243
    %v447 = vunpack.c.l.b16 %v244
    %v448 = vunpack.c.l.b16 %v245
    %v449 = vunpack.c.l.b16 %v246
    %v450 = vunpack.c.l.b16 %v247
    %v451 = vunpack.c.l.b16 %v248
    %v452 = vunpack.c.l.b16 %v249
    %v453 = vunpack.c.l.b16 %v250
    %v454 = vunpack.c.l.b16 %v251
    %v455 = vunpack.c.l.b16 %v252
    %v456 = vunpack.c.l.b16 %v253
    %v457 = vunpack.c.l.b16 %v254
    %v458 = vunpack.c.l.b16 %v255
    %v459 = vunpack.c.l.b16 %v256
    %v460 = vunpack.c.l.b16 %v257
    %v461 = vunpack.c.l.b16 %v258
    %v462 = vunpack.c.l.b16 %v259
    %v463 = vunpack.c.l.b16 %v260
    %v464 = vunpack.c.l.b16 %v261
    %v465 = vunpack.c.l.b16 %v262
    %v466 = vunpack.c.l.b16 %v263
    %v467 = vunpack.c.l.b16 %v264
    %v468 = vunpack.c.l.b16 %v265
    %v469 = vunpack.c.l.b16 %v266
    %v470 = vunpack.c.l.b16 %v267
    %v471 = vunpack.c.l.b16 %v268
    %v472 = vunpack.c.l.b16 %v269
    %v473 = vunpack.c.l.b16 %v270
    %v474 = vunpack.c.l.b16 %v271
    %v475 = vunpack.c.l.b16 %v272
    %v476 = vunpack.c.l.b16 %v273
    %v477 = vunpack.c.l.b16 %v274
    %v478 = vunpack.c.l.b16 %v275
    %v479 = vunpack.c.l.b16 %v276
    %v480 = vunpack.c.l.b16 %v277
    %v481 = vunpack.c.l.b16 %v278
    %v482 = vunpack.c.l.b16 %v279
    %v483 = vunpack.c.l.b16 %v280
    %v484 = vunpack.c.l.b16 %v281
    %v485 = vunpack.c.l.b16 %v282
    %v486 = vunpack.c.l.b16 %v283
    %v487 = vunpack.c.l.b16 %v284
    %v488 = vunpack.c.l.b16 %v285
    %v489 = vunpack.c.l.b16 %v286
    %v490 = vunpack.c.l.b16 %v287
    %v491 = vunpack.c.l.b16 %v288
    %v492 = vunpack.c.l.b16 %v289
    %v493 = vunpack.c.l.b16 %v290
    %v494 = vunpack.c.l.b16 %v291
    %v495 = vunpack.c.l.b16 %v292
    %v496 = vunpack.c.l.b16 %v293
    %v497 = vunpack.c.l.b16 %v294
    %v498 = vunpack.c.l.b16 %v295
    %v499 = vunpack.c.l.b16 %v296
    %v500 = vunpack.c.l.b16 %v297
    %v501 = vunpack.c.l.b16 %v298
    %v502 = vunpack.c.l.b16 %v299
    %v503 = vunpack.c.l.b16 %v300
    %v504 = vunpack.c.l.b16 %v301
    %v505 = vpack.c.b16 %v408, %v407
    %v506 = vpack.c.b16 %v410, %v409
    %v507 = vpack.c.b16 %v412, %v411
    %v508 = vpack.c.b16 %v414, %v413
    %v509 = vpack.c.b16 %v416, %v415
    %v510 = vpack.c.b16 %v418, %v417
    %v511 = vpack.c.b16 %v420, %v419
    %v512 = vpack.c.b16 %v422, %v421
    %v513 = vpack.c.b16 %v424, %v423
    %v514 = vpack.c.b16 %v426, %v425
    %v515 = vpack.c.b16 %v428, %v427
    %v516 = vpack.c.b16 %v430, %v429
    %v517 = vpack.c.b16 %v432, %v431
    %v518 = vpack.c.b16 %v434, %v433
    %v519 = vpack.c.b16 %v436, %v435
    %v520 = vpack.c.b16 %v438, %v437
    %v521 = vpack.c.b16 %v440, %v439
    %v522 = vpack.c.b16 %v442, %v441
    %v523 = vpack.c.b16 %v444, %v443
    %v524 = vpack.c.b16 %v446, %v445
    %v525 = vpack.c.b16 %v448, %v447
    %v526 = vpack.c.b16 %v450, %v449
    %v527 = vpack.c.b16 %v452, %v451
    %v528 = vpack.c.b16 %v454, %v453
    %v529 = vpack.c.b16 %v456, %v455
    %v530 = vpack.c.b16 %v458, %v457
    %v531 = vpack.c.b16 %v460, %v459
    %v532 = vpack.c.b16 %v462, %v461
    %v533 = vpack.c.b16 %v464, %v463
    %v534 = vpack.c.b16 %v466, %v465
    %v535 = vpack.c.b16 %v468, %v467
    %v536 = vpack.c.b16 %v470, %v469
    %v537 = vpack.c.b16 %v472, %v471
    %v538 = vpack.c.b16 %v474, %v473
    %v539 = vpack.c.b16 %v476, %v475
    %v540 = vpack.c.b16 %v478, %v477
    %v541 = vpack.c.b16 %v480, %v479
    %v542 = vpack.c.b16 %v482, %v481
    %v543 = vpack.c.b16 %v484, %v483
    %v544 = vpack.c.b16 %v486, %v485
    %v545 = vpack.c.b16 %v488, %v487
    %v546 = vpack.c.b16 %v490, %v489
    %v547 = vpack.c.b16 %v492, %v491
    %v548 = vpack.c.b16 %v494, %v493
    %v549 = vpack.c.b16 %v496, %v495
    %v550 = vpack.c.b16 %v498, %v497
    %v551 = vpack.c.b16 %v500, %v499
    %v552 = vpack.c.b16 %v502, %v501
    %v553 = vpack.c.b16 %v504, %v503
    %vm603 = vcmask 130048
    %v605 = vsel %vm603, %v203, 0
    %607 = vmatprep.subr.bf16.mxu0 0
    %608 = vmatpush1.bf16.msra.mxu0 %v505
    %609 = vmatprep.subr.bf16.mxu0 0
    %610 = vmatpush1.bf16.msra.mxu0 %v506
    %611 = vmatprep.subr.bf16.mxu0 0
    %612 = vmatpush1.bf16.msra.mxu0 %v507
    %613 = vmatprep.subr.bf16.mxu0 0
    %614 = vmatpush1.bf16.msra.mxu0 %v508
    %615 = vmatprep.subr.bf16.mxu0 0
    %616 = vmatpush1.bf16.msra.mxu0 %v509
    %617 = vmatprep.subr.bf16.mxu0 0
    %618 = vmatpush1.bf16.msra.mxu0 %v510
    %619 = vmatprep.subr.bf16.mxu0 0
    %620 = vmatpush1.bf16.msra.mxu0 %v511
    %621 = vmatprep.subr.bf16.mxu0 0
    %622 = vmatpush1.bf16.msra.mxu0 %v512
    %623 = vmatprep.subr.bf16.mxu0 0
    %624 = vmatpush1.bf16.msra.mxu0 %v513
    %625 = vmatprep.subr.bf16.mxu0 0
    %626 = vmatpush1.bf16.msra.mxu0 %v514
    %627 = vmatprep.subr.bf16.mxu0 0
    %628 = vmatpush1.bf16.msra.mxu0 %v515
    %629 = vmatprep.subr.bf16.mxu0 0
    %630 = vmatpush1.bf16.msra.mxu0 %v516
    %631 = vmatprep.subr.bf16.mxu0 0
    %632 = vmatpush1.bf16.msra.mxu0 %v517
    %633 = vmatprep.subr.bf16.mxu0 0
    %634 = vmatpush1.bf16.msra.mxu0 %v518
    %635 = vmatprep.subr.bf16.mxu0 0
    %636 = vmatpush1.bf16.msra.mxu0 %v519
    %637 = vmatprep.subr.bf16.mxu0 0
    %638 = vmatpush1.bf16.msra.mxu0 %v520
    %639 = vmatprep.mubr.bf16.mxu0 %v198
    %640 = vmatmul.mubr.bf16.gmra.mrb[0].mxu0 %v197
    %v641 = vpop.f32.mrb[0].mxu0
    %v642 = vadd.f32 %v307, %v641
    %v643 = vpop.f32.mrb[0].mxu0
    %v644 = vpop.f32.mrb[0].mxu0
    %v645 = vpop.f32.mrb[0].mxu0
    %646 = vdwg.mxu0
    %647 = vmatprep.subr.bf16.mxu0 0
    %648 = vmatpush1.bf16.msra.mxu0 %v521
    %649 = vmatprep.subr.bf16.mxu0 0
    %650 = vmatpush1.bf16.msra.mxu0 %v522
    %651 = vmatprep.subr.bf16.mxu0 0
    %652 = vmatpush1.bf16.msra.mxu0 %v523
    %653 = vmatprep.subr.bf16.mxu0 0
    %654 = vmatpush1.bf16.msra.mxu0 %v524
    %655 = vmatprep.subr.bf16.mxu0 0
    %656 = vmatpush1.bf16.msra.mxu0 %v525
    %657 = vmatprep.subr.bf16.mxu0 0
    %658 = vmatpush1.bf16.msra.mxu0 %v526
    %659 = vmatprep.subr.bf16.mxu0 0
    %660 = vmatpush1.bf16.msra.mxu0 %v527
    %661 = vmatprep.subr.bf16.mxu0 0
    %662 = vmatpush1.bf16.msra.mxu0 %v528
    %663 = vmatprep.subr.bf16.mxu0 0
    %664 = vmatpush1.bf16.msra.mxu0 %v529
    %665 = vmatprep.subr.bf16.mxu0 0
    %666 = vmatpush1.bf16.msra.mxu0 %v530
    %667 = vmatprep.subr.bf16.mxu0 0
    %668 = vmatpush1.bf16.msra.mxu0 %v531
    %669 = vmatprep.subr.bf16.mxu0 0
    %670 = vmatpush1.bf16.msra.mxu0 %v532
    %671 = vmatprep.subr.bf16.mxu0 0
    %672 = vmatpush1.bf16.msra.mxu0 %v533
    %673 = vmatprep.subr.bf16.mxu0 0
    %674 = vmatpush1.bf16.msra.mxu0 %v534
    %675 = vmatprep.subr.bf16.mxu0 0
    %676 = vmatpush1.bf16.msra.mxu0 %v535
    %677 = vmatprep.subr.bf16.mxu0 0
    %678 = vmatpush1.bf16.msra.mxu0 %v536
    %679 = vmatprep.mubr.bf16.mxu0 %v200
    %680 = vmatmul.mubr.bf16.gmra.mrb[0].mxu0 %v199
    %v681 = vpop.f32.mrb[0].mxu0
    %v682 = vadd.f32 %v642, %v681
    %v683 = vpop.f32.mrb[0].mxu0
    %v684 = vpop.f32.mrb[0].mxu0
    %v685 = vpop.f32.mrb[0].mxu0
    %686 = vdwg.mxu0
    %687 = vmatprep.subr.bf16.mxu0 0
    %688 = vmatpush1.bf16.msra.mxu0 %v537
    %689 = vmatprep.subr.bf16.mxu0 0
    %690 = vmatpush1.bf16.msra.mxu0 %v538
    %691 = vmatprep.subr.bf16.mxu0 0
    %692 = vmatpush1.bf16.msra.mxu0 %v539
    %693 = vmatprep.subr.bf16.mxu0 0
    %694 = vmatpush1.bf16.msra.mxu0 %v540
    %695 = vmatprep.subr.bf16.mxu0 0
    %696 = vmatpush1.bf16.msra.mxu0 %v541
    %697 = vmatprep.subr.bf16.mxu0 0
    %698 = vmatpush1.bf16.msra.mxu0 %v542
    %699 = vmatprep.subr.bf16.mxu0 0
    %700 = vmatpush1.bf16.msra.mxu0 %v543
    %701 = vmatprep.subr.bf16.mxu0 0
    %702 = vmatpush1.bf16.msra.mxu0 %v544
    %703 = vmatprep.subr.bf16.mxu0 0
    %704 = vmatpush1.bf16.msra.mxu0 %v545
    %705 = vmatprep.subr.bf16.mxu0 0
    %706 = vmatpush1.bf16.msra.mxu0 %v546
    %707 = vmatprep.subr.bf16.mxu0 0
    %708 = vmatpush1.bf16.msra.mxu0 %v547
    %709 = vmatprep.subr.bf16.mxu0 0
    %710 = vmatpush1.bf16.msra.mxu0 %v548
    %711 = vmatprep.subr.bf16.mxu0 0
    %712 = vmatpush1.bf16.msra.mxu0 %v549
    %713 = vmatprep.subr.bf16.mxu0 0
    %714 = vmatpush1.bf16.msra.mxu0 %v550
    %715 = vmatprep.subr.bf16.mxu0 0
    %716 = vmatpush1.bf16.msra.mxu0 %v551
    %717 = vmatprep.subr.bf16.mxu0 0
    %718 = vmatpush1.bf16.msra.mxu0 %v552
    %719 = vmatprep.mubr.bf16.mxu0 %v202
    %720 = vmatmul.mubr.bf16.gmra.mrb[0].mxu0 %v201
    %v721 = vpop.f32.mrb[0].mxu0
    %v722 = vadd.f32 %v682, %v721
    %v723 = vpop.f32.mrb[0].mxu0
    %v724 = vpop.f32.mrb[0].mxu0
    %v725 = vpop.f32.mrb[0].mxu0
    %726 = vdwg.mxu0
    %727 = vmatprep.subr.bf16.mxu0 0
    %728 = vmatpush1.bf16.msra.mxu0 %v553
    %729 = vmatprep.subr.bf16.mxu0 0
    %730 = vmatpush1.bf16.msra.mxu0 0
    %731 = vmatprep.subr.bf16.mxu0 0
    %732 = vmatpush1.bf16.msra.mxu0 0
    %733 = vmatprep.subr.bf16.mxu0 0
    %734 = vmatpush1.bf16.msra.mxu0 0
    %735 = vmatprep.subr.bf16.mxu0 0
    %736 = vmatpush1.bf16.msra.mxu0 0
    %737 = vmatprep.subr.bf16.mxu0 0
    %738 = vmatpush1.bf16.msra.mxu0 0
    %739 = vmatprep.subr.bf16.mxu0 0
    %740 = vmatpush1.bf16.msra.mxu0 0
    %741 = vmatprep.subr.bf16.mxu0 0
    %742 = vmatpush1.bf16.msra.mxu0 0
    %743 = vmatprep.subr.bf16.mxu0 0
    %744 = vmatpush1.bf16.msra.mxu0 0
    %745 = vmatprep.subr.bf16.mxu0 0
    %746 = vmatpush1.bf16.msra.mxu0 0
    %747 = vmatprep.subr.bf16.mxu0 0
    %748 = vmatpush1.bf16.msra.mxu0 0
    %749 = vmatprep.subr.bf16.mxu0 0
    %750 = vmatpush1.bf16.msra.mxu0 0
    %751 = vmatprep.subr.bf16.mxu0 0
    %752 = vmatpush1.bf16.msra.mxu0 0
    %753 = vmatprep.subr.bf16.mxu0 0
    %754 = vmatpush1.bf16.msra.mxu0 0
    %755 = vmatprep.subr.bf16.mxu0 0
    %756 = vmatpush1.bf16.msra.mxu0 0
    %757 = vmatprep.subr.bf16.mxu0 0
    %758 = vmatpush1.bf16.msra.mxu0 0
    %759 = vmatprep.mubr.bf16.mxu0 0
    %760 = vmatmul.mubr.bf16.gmra.mrb[0].mxu0 %v605
    %v761 = vpop.f32.mrb[0].mxu0
    %v762 = vadd.f32 %v722, %v761
    %v763 = vpop.f32.mrb[0].mxu0
    %v764 = vpop.f32.mrb[0].mxu0
    %v765 = vpop.f32.mrb[0].mxu0
    %766 = vdwg.mxu0
    %v767 = vpack.c.bf16 %v762, %v762
    %v768 = vmul.bf16 %v767, 1056980736
    %v769 = vtanh.bf16.pop %v768
    %v770 = vmul.bf16 %v769, 1056980736
    %v771 = vadd.bf16 %v770, 1056980736
    %v772 = vld [vmem:[#allocation7] sm:$0xf]
    %v773 = vld [vmem:[#allocation7 + $0x4] sm:$0xf]
    %v774 = vld [vmem:[#allocation7 + $0x8] sm:$0xf]
    %v775 = vld [vmem:[#allocation7 + $0xc] sm:$0xf]
    %v776 = vld [vmem:[#allocation7 + $0x10] sm:$0xf]
    %v777 = vld [vmem:[#allocation7 + $0x14] sm:$0xf]
    %v778 = vld [vmem:[#allocation7 + $0x18] sm:$0xf]
    %v779 = vld [vmem:[#allocation7 + $0x1c] sm:$0xf]
    %v780 = vld [vmem:[#allocation7 + $0x20] sm:$0xf]
    %v781 = vld [vmem:[#allocation7 + $0x24] sm:$0xf]
    %v782 = vld [vmem:[#allocation7 + $0x28] sm:$0xf]
    %v783 = vld [vmem:[#allocation7 + $0x2c] sm:$0xf]
    %v784 = vld [vmem:[#allocation7 + $0x30] sm:$0xf]
    %v785 = vld [vmem:[#allocation7 + $0x34] sm:$0xf]
    %v786 = vld [vmem:[#allocation7 + $0x38] sm:$0xf]
    %v787 = vld [vmem:[#allocation7 + $0x3c] sm:$0xf]
    %v788 = vld [vmem:[%s4] sm:$0x1]
    %v790 = vlaneseq
    %v791 = vshrl.u32 %v790, 7
    %v792 = vsub.s32 0, %v791
    %v793 = vrot.slane %v788, %v792
    %v811 = vunpack.c.l.b16 %v772
    %v812 = vunpack.c.l.b16 %v773
    %v813 = vunpack.c.l.b16 %v774
    %v814 = vunpack.c.l.b16 %v775
    %v815 = vunpack.c.l.b16 %v776
    %v816 = vunpack.c.l.b16 %v777
    %v817 = vunpack.c.l.b16 %v778
    %v818 = vunpack.c.l.b16 %v779
    %v819 = vunpack.c.l.b16 %v780
    %v820 = vunpack.c.l.b16 %v781
    %v821 = vunpack.c.l.b16 %v782
    %v822 = vunpack.c.l.b16 %v783
    %v823 = vunpack.c.l.b16 %v784
    %v824 = vunpack.c.l.b16 %v785
    %v825 = vunpack.c.l.b16 %v786
    %v826 = vunpack.c.l.b16 %v787
    %v827 = vpack.c.b16 %v812, %v811
    %v828 = vpack.c.b16 %v814, %v813
    %v829 = vpack.c.b16 %v816, %v815
    %v830 = vpack.c.b16 %v818, %v817
    %v831 = vpack.c.b16 %v820, %v819
    %v832 = vpack.c.b16 %v822, %v821
    %v833 = vpack.c.b16 %v824, %v823
    %v834 = vpack.c.b16 %v826, %v825
    %843 = vmatprep.subr.bf16.mxu0 0
    %844 = vmatpush1.bf16.msra.mxu0 %v827
    %845 = vmatprep.subr.bf16.mxu0 0
    %846 = vmatpush1.bf16.msra.mxu0 %v828
    %847 = vmatprep.subr.bf16.mxu0 0
    %848 = vmatpush1.bf16.msra.mxu0 %v829
    %849 = vmatprep.subr.bf16.mxu0 0
    %850 = vmatpush1.bf16.msra.mxu0 %v830
    %851 = vmatprep.subr.bf16.mxu0 0
    %852 = vmatpush1.bf16.msra.mxu0 %v831
    %853 = vmatprep.subr.bf16.mxu0 0
    %854 = vmatpush1.bf16.msra.mxu0 %v832
    %855 = vmatprep.subr.bf16.mxu0 0
    %856 = vmatpush1.bf16.msra.mxu0 %v833
    %857 = vmatprep.subr.bf16.mxu0 0
    %858 = vmatpush1.bf16.msra.mxu0 %v834
    %859 = vmatprep.subr.bf16.mxu0 0
    %860 = vmatpush1.bf16.msra.mxu0 0
    %861 = vmatprep.subr.bf16.mxu0 0
    %862 = vmatpush1.bf16.msra.mxu0 0
    %863 = vmatprep.subr.bf16.mxu0 0
    %864 = vmatpush1.bf16.msra.mxu0 0
    %865 = vmatprep.subr.bf16.mxu0 0
    %866 = vmatpush1.bf16.msra.mxu0 0
    %867 = vmatprep.subr.bf16.mxu0 0
    %868 = vmatpush1.bf16.msra.mxu0 0
    %869 = vmatprep.subr.bf16.mxu0 0
    %870 = vmatpush1.bf16.msra.mxu0 0
    %871 = vmatprep.subr.bf16.mxu0 0
    %872 = vmatpush1.bf16.msra.mxu0 0
    %873 = vmatprep.subr.bf16.mxu0 0
    %874 = vmatpush1.bf16.msra.mxu0 0
    %875 = vmatprep.mubr.bf16.mxu0 0
    %876 = vmatmul.mubr.bf16.gmra.mrb[0].mxu0 %v771
    %v877 = vpop.f32.mrb[0].mxu0
    %v878 = vadd.f32 %v793, %v877
    %v879 = vpop.f32.mrb[0].mxu0
    %v880 = vpop.f32.mrb[0].mxu0
    %v881 = vpop.f32.mrb[0].mxu0
    %882 = vdwg.mxu0
    %v883 = vpack.c.bf16 %v878, %v878
    %v884 = vmul.bf16 %v883, 1056980736
    %v885 = vtanh.bf16.pop %v884
    %v886 = vmul.bf16 %v885, 1056980736
    %v887 = vadd.bf16 %v886, 1056980736
    %v888 = vld [vmem:[#allocation8] sm:$0xf]
    %v889 = vld [vmem:[#allocation8 + $0x4] sm:$0xf]
    %v890 = vld [vmem:[#allocation8 + $0x8] sm:$0xf]
    %v891 = vld [vmem:[#allocation8 + $0xc] sm:$0xf]
    %v892 = vld [vmem:[#allocation8 + $0x10] sm:$0xf]
    %v893 = vld [vmem:[#allocation8 + $0x14] sm:$0xf]
    %v894 = vld [vmem:[#allocation8 + $0x18] sm:$0xf]
    %v895 = vld [vmem:[#allocation8 + $0x1c] sm:$0xf]
    %v896 = vld [vmem:[#allocation8 + $0x20] sm:$0xf]
    %v897 = vld [vmem:[#allocation8 + $0x24] sm:$0xf]
    %v898 = vld [vmem:[#allocation8 + $0x28] sm:$0xf]
    %v899 = vld [vmem:[#allocation8 + $0x2c] sm:$0xf]
    %v900 = vld [vmem:[#allocation8 + $0x30] sm:$0xf]
    %v901 = vld [vmem:[#allocation8 + $0x34] sm:$0xf]
    %v902 = vld [vmem:[#allocation8 + $0x38] sm:$0xf]
    %v903 = vld [vmem:[#allocation8 + $0x3c] sm:$0xf]
    %v904 = vld [vmem:[%s6] sm:$0x1]
    %v906 = vlaneseq
    %v907 = vshrl.u32 %v906, 7
    %v908 = vsub.s32 0, %v907
    %v909 = vrot.slane %v904, %v908
    %v927 = vunpack.c.l.b16 %v888
    %v928 = vunpack.c.l.b16 %v889
    %v929 = vunpack.c.l.b16 %v890
    %v930 = vunpack.c.l.b16 %v891
    %v931 = vunpack.c.l.b16 %v892
    %v932 = vunpack.c.l.b16 %v893
    %v933 = vunpack.c.l.b16 %v894
    %v934 = vunpack.c.l.b16 %v895
    %v935 = vunpack.c.l.b16 %v896
    %v936 = vunpack.c.l.b16 %v897
    %v937 = vunpack.c.l.b16 %v898
    %v938 = vunpack.c.l.b16 %v899
    %v939 = vunpack.c.l.b16 %v900
    %v940 = vunpack.c.l.b16 %v901
    %v941 = vunpack.c.l.b16 %v902
    %v942 = vunpack.c.l.b16 %v903
    %v943 = vpack.c.b16 %v928, %v927
    %v944 = vpack.c.b16 %v930, %v929
    %v945 = vpack.c.b16 %v932, %v931
    %v946 = vpack.c.b16 %v934, %v933
    %v947 = vpack.c.b16 %v936, %v935
    %v948 = vpack.c.b16 %v938, %v937
    %v949 = vpack.c.b16 %v940, %v939
    %v950 = vpack.c.b16 %v942, %v941
    %959 = vmatprep.subr.bf16.mxu0 0
    %960 = vmatpush1.bf16.msra.mxu0 %v943
    %961 = vmatprep.subr.bf16.mxu0 0
    %962 = vmatpush1.bf16.msra.mxu0 %v944
    %963 = vmatprep.subr.bf16.mxu0 0
    %964 = vmatpush1.bf16.msra.mxu0 %v945
    %965 = vmatprep.subr.bf16.mxu0 0
    %966 = vmatpush1.bf16.msra.mxu0 %v946
    %967 = vmatprep.subr.bf16.mxu0 0
    %968 = vmatpush1.bf16.msra.mxu0 %v947
    %969 = vmatprep.subr.bf16.mxu0 0
    %970 = vmatpush1.bf16.msra.mxu0 %v948
    %971 = vmatprep.subr.bf16.mxu0 0
    %972 = vmatpush1.bf16.msra.mxu0 %v949
    %973 = vmatprep.subr.bf16.mxu0 0
    %974 = vmatpush1.bf16.msra.mxu0 %v950
    %975 = vmatprep.subr.bf16.mxu0 0
    %976 = vmatpush1.bf16.msra.mxu0 0
    %977 = vmatprep.subr.bf16.mxu0 0
    %978 = vmatpush1.bf16.msra.mxu0 0
    %979 = vmatprep.subr.bf16.mxu0 0
    %980 = vmatpush1.bf16.msra.mxu0 0
    %981 = vmatprep.subr.bf16.mxu0 0
    %982 = vmatpush1.bf16.msra.mxu0 0
    %983 = vmatprep.subr.bf16.mxu0 0
    %984 = vmatpush1.bf16.msra.mxu0 0
    %985 = vmatprep.subr.bf16.mxu0 0
    %986 = vmatpush1.bf16.msra.mxu0 0
    %987 = vmatprep.subr.bf16.mxu0 0
    %988 = vmatpush1.bf16.msra.mxu0 0
    %989 = vmatprep.subr.bf16.mxu0 0
    %990 = vmatpush1.bf16.msra.mxu0 0
    %991 = vmatprep.mubr.bf16.mxu0 0
    %992 = vmatmul.mubr.bf16.gmra.mrb[0].mxu0 %v887
    %v993 = vpop.f32.mrb[0].mxu0
    %v994 = vadd.f32 %v909, %v993
    %v995 = vpop.f32.mrb[0].mxu0
    %v996 = vpop.f32.mrb[0].mxu0
    %v997 = vpop.f32.mrb[0].mxu0
    %998 = vdwg.mxu0
    %v999 = vpack.c.bf16 %v994, %v994
    %v1000 = vmul.bf16 %v999, 1056980736
    %v1001 = vtanh.bf16.pop %v1000
    %v1002 = vmul.bf16 %v1001, 1056980736
    %v1003 = vadd.bf16 %v1002, 1056980736
    %v1004 = vld [vmem:[#allocation10] sm:$0xf]
    %v1005 = vld [vmem:[#allocation10 + $0x4] sm:$0xf]
    %v1006 = vld [vmem:[#allocation10 + $0x8] sm:$0xf]
    %v1007 = vld [vmem:[#allocation10 + $0xc] sm:$0xf]
    %v1008 = vld [vmem:[#allocation10 + $0x10] sm:$0xf]
    %v1009 = vld [vmem:[#allocation10 + $0x14] sm:$0xf]
    %v1010 = vld [vmem:[#allocation10 + $0x18] sm:$0xf]
    %v1011 = vld [vmem:[#allocation10 + $0x1c] sm:$0xf]
    %v1012 = vld [vmem:[#allocation10 + $0x20] sm:$0xf]
    %v1013 = vld [vmem:[#allocation10 + $0x24] sm:$0xf]
    %v1014 = vld [vmem:[#allocation10 + $0x28] sm:$0xf]
    %v1015 = vld [vmem:[#allocation10 + $0x2c] sm:$0xf]
    %v1016 = vld [vmem:[#allocation10 + $0x30] sm:$0xf]
    %v1017 = vld [vmem:[#allocation10 + $0x34] sm:$0xf]
    %v1018 = vld [vmem:[#allocation10 + $0x38] sm:$0xf]
    %v1019 = vld [vmem:[#allocation10 + $0x3c] sm:$0xf]
    %v1020 = vld [vmem:[%s8] sm:$0x1]
    %v1022 = vlaneseq
    %v1023 = vshrl.u32 %v1022, 7
    %v1024 = vsub.s32 0, %v1023
    %v1025 = vrot.slane %v1020, %v1024
    %v1043 = vunpack.c.l.b16 %v1004
    %v1044 = vunpack.c.l.b16 %v1005
    %v1045 = vunpack.c.l.b16 %v1006
    %v1046 = vunpack.c.l.b16 %v1007
    %v1047 = vunpack.c.l.b16 %v1008
    %v1048 = vunpack.c.l.b16 %v1009
    %v1049 = vunpack.c.l.b16 %v1010
    %v1050 = vunpack.c.l.b16 %v1011
    %v1051 = vunpack.c.l.b16 %v1012
    %v1052 = vunpack.c.l.b16 %v1013
    %v1053 = vunpack.c.l.b16 %v1014
    %v1054 = vunpack.c.l.b16 %v1015
    %v1055 = vunpack.c.l.b16 %v1016
    %v1056 = vunpack.c.l.b16 %v1017
    %v1057 = vunpack.c.l.b16 %v1018
    %v1058 = vunpack.c.l.b16 %v1019
    %v1059 = vpack.c.b16 %v1044, %v1043
    %v1060 = vpack.c.b16 %v1046, %v1045
    %v1061 = vpack.c.b16 %v1048, %v1047
    %v1062 = vpack.c.b16 %v1050, %v1049
    %v1063 = vpack.c.b16 %v1052, %v1051
    %v1064 = vpack.c.b16 %v1054, %v1053
    %v1065 = vpack.c.b16 %v1056, %v1055
    %v1066 = vpack.c.b16 %v1058, %v1057
    %1075 = vmatprep.subr.bf16.mxu0 0
    %1076 = vmatpush1.bf16.msra.mxu0 %v1059
    %1077 = vmatprep.subr.bf16.mxu0 0
    %1078 = vmatpush1.bf16.msra.mxu0 %v1060
    %1079 = vmatprep.subr.bf16.mxu0 0
    %1080 = vmatpush1.bf16.msra.mxu0 %v1061
    %1081 = vmatprep.subr.bf16.mxu0 0
    %1082 = vmatpush1.bf16.msra.mxu0 %v1062
    %1083 = vmatprep.subr.bf16.mxu0 0
    %1084 = vmatpush1.bf16.msra.mxu0 %v1063
    %1085 = vmatprep.subr.bf16.mxu0 0
    %1086 = vmatpush1.bf16.msra.mxu0 %v1064
    %1087 = vmatprep.subr.bf16.mxu0 0
    %1088 = vmatpush1.bf16.msra.mxu0 %v1065
    %1089 = vmatprep.subr.bf16.mxu0 0
    %1090 = vmatpush1.bf16.msra.mxu0 %v1066
    %1091 = vmatprep.subr.bf16.mxu0 0
    %1092 = vmatpush1.bf16.msra.mxu0 0
    %1093 = vmatprep.subr.bf16.mxu0 0
    %1094 = vmatpush1.bf16.msra.mxu0 0
    %1095 = vmatprep.subr.bf16.mxu0 0
    %1096 = vmatpush1.bf16.msra.mxu0 0
    %1097 = vmatprep.subr.bf16.mxu0 0
    %1098 = vmatpush1.bf16.msra.mxu0 0
    %1099 = vmatprep.subr.bf16.mxu0 0
    %1100 = vmatpush1.bf16.msra.mxu0 0
    %1101 = vmatprep.subr.bf16.mxu0 0
    %1102 = vmatpush1.bf16.msra.mxu0 0
    %1103 = vmatprep.subr.bf16.mxu0 0
    %1104 = vmatpush1.bf16.msra.mxu0 0
    %1105 = vmatprep.subr.bf16.mxu0 0
    %1106 = vmatpush1.bf16.msra.mxu0 0
    %1107 = vmatprep.mubr.bf16.mxu0 0
    %1108 = vmatmul.mubr.bf16.gmra.mrb[0].mxu0 %v1003
    %v1109 = vpop.f32.mrb[0].mxu0
    %v1110 = vadd.f32 %v1025, %v1109
    %v1111 = vpop.f32.mrb[0].mxu0
    %v1112 = vpop.f32.mrb[0].mxu0
    %v1113 = vpop.f32.mrb[0].mxu0
    %1114 = vdwg.mxu0
    %v1115 = vpack.c.bf16 %v1110, %v1110
    %v1116 = vmul.bf16 %v1115, 1056980736
    %v1117 = vtanh.bf16.pop %v1116
    %v1118 = vmul.bf16 %v1117, 1056980736
    %v1119 = vadd.bf16 %v1118, 1056980736
    %v1122 = vunpack.c.l.s4 1966171168
    %v1123 = vunpack.c.0.s8 %v1122
    %v1124 = vlaneseq
    %v1125 = vshrl.u32 %v1124, 7
    %v1126 = vsub.s32 %v1123, %v1125
    %v1127 = vrot.slane %v1119, %v1126
    %v1128 = vcombine.high %v1127, %v1127
    %v1130 = vunpack.c.l.s4 1966171168
    %v1131 = vunpack.c.0.s8 %v1130
    %v1132 = vlaneseq
    %v1133 = vshrl.u32 %v1132, 7
    %v1134 = vsub.s32 %v1131, %v1133
    %v1135 = vrot.slane %v1127, %v1134
    %v1137 = vunpack.c.l.s4 1966171168
    %v1138 = vunpack.c.0.s8 %v1137
    %v1139 = vlaneseq
    %v1140 = vshrl.u32 %v1139, 7
    %v1141 = vsub.s32 %v1138, %v1140
    %v1142 = vrot.slane %v1128, %v1141
    %v1143 = vcombine.high %v1135, %v1135
    %v1144 = vcombine.high %v1142, %v1142
    %1149 = vst [vmem:[#allocation11] sm:$0x1] %v1135
    %1150 = vst [vmem:[#allocation11 + $0x1] sm:$0x1] %v1142
    %1151 = vst [vmem:[#allocation11 + $0x2] sm:$0x1] %v1143
    %1152 = vst [vmem:[#allocation11 + $0x3] sm:$0x1] %v1144
    // Predicated region
    $region58: #{tpu_custom_call.1} parent=1 // pred_check
      _
    $region59: #{tpu_custom_call.1} parent=1 // pred_check_branch
      %1154 = sbr.rel (0) target = $region61
    $region60: #{tpu_custom_call.1} parent=1 // pred_region
      %s1156 = ssub.s32 64, 16
      %1157 = vsyncadd [#allocation4], %s1156
      %s1158 = sshll.u32 [#allocation11], 4
      %s1159 = int_to_ptr.vmem [resolvable:$true] %s1158
      %1164 = dma.vmem_to_hbm [thread:$0]  %s1159, 16, %s9, [#allocation4], 16, 16, 1
    $region61: #{tpu_custom_call.1} parent=1 // pred_fallthru
      _
    // Predicated region
    $region62: #{tpu_custom_call.1} parent=1 // pred_check
      _
    $region63: #{tpu_custom_call.1} parent=1 // pred_check_branch
      %1166 = sbr.rel (0) target = $region65
    $region64: #{tpu_custom_call.1} parent=1 // pred_region
      %1167 = dma.done [#allocation4], 64
    $region65: #{tpu_custom_call.1} parent=1 // pred_fallthru
      _
    %1168 = vsyncpa [#allocation3], 1
    %1169 = vsyncpa [#allocation6], 1
    %1170 = vsyncpa [#allocation9], 1
    %1171 = vsyncpa [#allocation4], 1

</llo_original>
